<compile_context>
chip_gen: v5e
topology: v5e:2x2
jax: 0.10.0
libtpu: 0.0.40
codegen_flags: <defaults>
</compile_context>

<pallas_src>
import functools

import jax
import jax.numpy as jnp
from jax.experimental import pallas as pl
from jax.experimental.pallas import tpu as pltpu


def _round_up(n, m):
    return ((n + m - 1) // m) * m


def fused_linear_kernel(x_ref, w_ref, b_ref, o_ref):
    # One MXU pass per (tb, K) batch tile; output block is lane-dense
    # (last dim padded to a multiple of 128), so stores are unmasked vst.
    o_ref[...] = (
        jnp.dot(x_ref[...], w_ref[...], preferred_element_type=jnp.float32)
        + b_ref[...]
    )


@functools.partial(jax.jit, static_argnames=("block_b",))
def mlp_forward(x, params, *, block_b=512):
    """Forward pass of the activation-free 5-layer MLP.

    x: (B, input_dim) float32.
    params: list of (w, b) with w = W_pt.T of shape (in, out), b of shape (1, out).
    """
    B, in_dim = x.shape

    # --- exact algebraic fold (valid ONLY because forward has no activations)
    w_eff, b_eff = params[0]
    for w, b in params[1:]:
        b_eff = b_eff @ w + b
        w_eff = w_eff @ w
    out_dim = w_eff.shape[1]

    # --- pad for lane-dense output and sublane-aligned batch tiles ----------
    n_pad = _round_up(out_dim, 128)            # lane-dense output width
    tb = min(block_b, _round_up(B, 8))         # batch tile, multiple of 8
    b_pad = _round_up(B, tb)

    x_p = jnp.pad(x, ((0, b_pad - B), (0, 0)))
    w_p = jnp.pad(w_eff, ((0, 0), (0, n_pad - out_dim)))
    b_p = jnp.pad(b_eff, ((0, 0), (0, n_pad - out_dim)))

    grid = (b_pad // tb,)
    out_p = pl.pallas_call(
        fused_linear_kernel,
        out_shape=jax.ShapeDtypeStruct((b_pad, n_pad), jnp.float32),
        grid=grid,
        in_specs=[
            pl.BlockSpec((tb, in_dim), lambda i: (i, 0)),     # batch tile of x
            pl.BlockSpec((in_dim, n_pad), lambda i: (0, 0)),  # folded weight (VMEM-resident)
            pl.BlockSpec((1, n_pad), lambda i: (0, 0)),       # folded bias (VMEM-resident)
        ],
        out_specs=pl.BlockSpec((tb, n_pad), lambda i: (i, 0)),
        compiler_params=pltpu.CompilerParams(
            dimension_semantics=("parallel",),  # shard batch tiles across TCs (v7x megacore)
        ),
    )(x_p, w_p, b_p)

    # strip batch / lane padding outside the kernel
    return out_p[:B, :out_dim]


def init_params(key, input_dim, output_dim):
    """Deterministic init mimicking nn.Linear's U(-1/sqrt(fan_in), 1/sqrt(fan_in))."""
    dims = [input_dim, 64, 32, 16, 8, output_dim]
    params = []
    for i in range(5):
        fan_in, fan_out = dims[i], dims[i + 1]
        key, kw, kb = jax.random.split(key, 3)
        bound = 1.0 / jnp.sqrt(jnp.float32(fan_in))
        w = jax.random.uniform(kw, (fan_in, fan_out), jnp.float32, -bound, bound)
        b = jax.random.uniform(kb, (1, fan_out), jnp.float32, -bound, bound)
        params.append((w, b))
    return params


def reference_forward(x, params):
    # Un-folded 5-layer chain (matches the PyTorch forward op-by-op).
    h = x
    for w, b in params:
        h = h @ w + b
    return h


if __name__ == "__main__":
    # Diabetes-style regression: input_dim=10 features, output_dim=1 target.
    input_dim, output_dim, batch = 10, 1, 8

    key = jax.random.PRNGKey(0)
    key, kx = jax.random.split(key)
    x = jax.random.normal(kx, (batch, input_dim), jnp.float32)
    params = init_params(key, input_dim, output_dim)

    out = mlp_forward(x, params)
    out = jax.block_until_ready(out)

    ref = reference_forward(x, params)
    assert out.shape == (batch, output_dim), out.shape
    assert jnp.allclose(out, ref, atol=1e-4, rtol=1e-4), float(
        jnp.max(jnp.abs(out - ref))
    )

    print("KERNEL_OK")
</pallas_src>

<mosaic_0001>
module attributes {stable_mosaic.version = 11 : i64} {
  func.func @fused_linear_kernel(%arg0: i32, %arg1: memref<8x10xf32, #tpu.memory_space<vmem>>, %arg2: memref<10x128xf32, #tpu.memory_space<vmem>>, %arg3: memref<1x128xf32, #tpu.memory_space<vmem>>, %arg4: memref<8x128xf32, #tpu.memory_space<vmem>>) attributes {dimension_semantics = [#tpu.dimension_semantics<parallel>], iteration_bounds = array<i64: 1>, scalar_prefetch = 0 : i64, scratch_operands = 0 : i64, tpu.core_type = #tpu.core_type<tc>, window_params = [{transform_indices = @transform_0, window_bounds = array<i64: 8, 10>}, {pipeline_mode = #tpu.pipeline_mode<synchronous>, transform_indices = @transform_1, window_bounds = array<i64: 10, 128>}, {pipeline_mode = #tpu.pipeline_mode<synchronous>, transform_indices = @transform_2, window_bounds = array<i64: 1, 128>}, {transform_indices = @transform_3, window_bounds = array<i64: 8, 128>}]} {
    %c0 = arith.constant 0 : index
    %c0_0 = arith.constant 0 : index
    %0 = vector.load %arg1[%c0, %c0_0] : memref<8x10xf32, #tpu.memory_space<vmem>>, vector<8x10xf32>
    %c0_1 = arith.constant 0 : index
    %c0_2 = arith.constant 0 : index
    %1 = vector.load %arg2[%c0_1, %c0_2] : memref<10x128xf32, #tpu.memory_space<vmem>>, vector<10x128xf32>
    %cst = arith.constant dense<0.000000e+00> : vector<8x128xf32>
    %2 = tpu.matmul %0, %1, %cst {dimension_numbers = #tpu.dot_dimension_numbers<[1], [0], [0], [1], [0, 0, 1, 1], [], []>} : vector<8x10xf32>, vector<10x128xf32>, vector<8x128xf32> -> vector<8x128xf32>
    %c0_3 = arith.constant 0 : index
    %c0_4 = arith.constant 0 : index
    %3 = vector.load %arg3[%c0_3, %c0_4] : memref<1x128xf32, #tpu.memory_space<vmem>>, vector<1x128xf32>
    %4 = vector.broadcast %3 : vector<1x128xf32> to vector<8x128xf32>
    %5 = arith.addf %2, %4 : vector<8x128xf32>
    %c0_5 = arith.constant 0 : index
    %c0_6 = arith.constant 0 : index
    %6 = vector.load %arg4[%c0_5, %c0_6] : memref<8x128xf32, #tpu.memory_space<vmem>>, vector<8x128xf32>
    tpu.vector_store %arg4[%c0_5, %c0_6], %5 {strides = array<i32>} : memref<8x128xf32, #tpu.memory_space<vmem>>, vector<8x128xf32>,
    return
  }
  func.func @transform_0(%arg0: i32) -> (i32, i32) {
    %c0_i32 = arith.constant 0 : i32
    %c0_i32_0 = arith.constant 0 : i32
    return %arg0, %c0_i32 : i32, i32
  }
  func.func @transform_1(%arg0: i32) -> (i32, i32) {
    %c0_i32 = arith.constant 0 : i32
    %c0_i32_0 = arith.constant 0 : i32
    %c0_i32_1 = arith.constant 0 : i32
    return %c0_i32, %c0_i32_0 : i32, i32
  }
  func.func @transform_2(%arg0: i32) -> (i32, i32) {
    %c0_i32 = arith.constant 0 : i32
    %c0_i32_0 = arith.constant 0 : i32
    %c0_i32_1 = arith.constant 0 : i32
    return %c0_i32, %c0_i32_0 : i32, i32
  }
  func.func @transform_3(%arg0: i32) -> (i32, i32) {
    %c0_i32 = arith.constant 0 : i32
    %c0_i32_0 = arith.constant 0 : i32
    return %arg0, %c0_i32 : i32, i32
  }
}

</mosaic_0001>

<llo_original>
// kernel: mlp_forward.1
$region0: #{mlp_forward.1}
  #allocation0 [shape = 'u32[]', space=smem, size = 0x4, offset = 0x4, fixed_abs, tag = 'smem constant byte address 0x4 - core index']
  #allocation1 [shape = 'u32[72,128]{1,0:T(1,128)}', space=vmem, size = 0x9000, scoped, tag = 'internal scratch']
  %s0 = inlined_call_operand.vmem [shape: f32[8,10], index: 0, kind: input, shape index: {}]
  %s1 = inlined_call_operand.vmem [shape: f32[10,128], index: 1, kind: input, shape index: {}]
  %s2 = inlined_call_operand.vmem [shape: f32[1,128], index: 2, kind: input, shape index: {}]
  %s3 = inlined_call_operand.vmem [shape: f32[8,128], index: 3, kind: output, shape index: {}]
  %s4 = sld [smem:[#allocation0]]
  $region22: #{mlp_forward.1} parent=0
    _
  %s6 = ssub.s32 1, %s4
  %s7 = scalar_select 0, %s6, %s4
  // Predicated region
  $region2: #{mlp_forward.1} parent=0 // pred_check
    _
  $region3: #{mlp_forward.1} parent=0 // pred_check_branch
    %9 = sbr.rel (0) target = $region5
  $region4: #{mlp_forward.1} parent=0 // pred_region
    _
  $region5: #{mlp_forward.1} parent=0 // pred_fallthru
    _
  // Predicated region
  $region6: #{mlp_forward.1} parent=0 // pred_check
    _
  $region7: #{mlp_forward.1} parent=0 // pred_check_branch
    %11 = sbr.rel (0) target = $region9
  $region8: #{mlp_forward.1} parent=0 // pred_region
    _
  $region9: #{mlp_forward.1} parent=0 // pred_fallthru
    _
  // Predicated region
  $region10: #{mlp_forward.1} parent=0 // pred_check
    _
  $region11: #{mlp_forward.1} parent=0 // pred_check_branch
    %13 = sbr.rel (0) target = $region13
  $region12: #{mlp_forward.1} parent=0 // pred_region
    _
  $region13: #{mlp_forward.1} parent=0 // pred_fallthru
    _
  %v14 = vld [vmem:[%s0] sm:$0xff]
  %v15 = vld [vmem:[%s1] sm:$0xff]
  %v16 = vld [vmem:[%s1 + $0x8] sm:$0x3]
  %v17 = vld [vmem:[%s2] sm:$0x1]
  %v19 = vperm.slane %v17, 0
  %vm21 = vcmask 80896
  %v23 = vsel %vm21, %v14, 0
  %vm25 = vcmask 1041408
  %v27 = vsel %vm25, %v16, 0
  %29 = vmatpush.msra.mxu0 0.0
  %30 = vmatpush.msra.mxu0 0.0
  %31 = vmatpush.msra.mxu0 0.0
  %32 = vmatpush.msra.mxu0 0.0
  %33 = vmatpush.msra.mxu0 0.0
  %34 = vmatpush.msra.mxu0 0.0
  %35 = vmatpush.msra.mxu0 0.0
  %36 = vmatpush.msra.mxu0 0.0
  %37 = vmatpush.msra.mxu0 0.0
  %38 = vmatpush.msra.mxu0 0.0
  %39 = vmatpush.msra.mxu0 0.0
  %40 = vmatpush.msra.mxu0 0.0
  %41 = vmatpush.msra.mxu0 0.0
  %42 = vmatpush.msra.mxu0 0.0
  %43 = vmatpush.msra.mxu0 %v27
  %44 = vmatpush.msra.mxu0 %v15
  %45 = vmatmul.f32.gmra.mxu0 %v23
  %v46 = vpop.f32.mrf.mxu0
  %v47 = vadd.f32 %v19, %v46
  %48 = vdwg.mxu0
  %49 = vst [vmem:[%s3] sm:$0xff] %v47
  // Predicated region
  $region14: #{mlp_forward.1} parent=0 // pred_check
    _
  $region15: #{mlp_forward.1} parent=0 // pred_check_branch
    %51 = sbr.rel (0) target = $region17
  $region16: #{mlp_forward.1} parent=0 // pred_region
    _
  $region17: #{mlp_forward.1} parent=0 // pred_fallthru
    _
  // Predicated region
  $region18: #{mlp_forward.1} parent=0 // pred_check
    _
  $region19: #{mlp_forward.1} parent=0 // pred_check_branch
    %53 = sbr.rel (0) target = $region21
  $region20: #{mlp_forward.1} parent=0 // pred_region
    _
  $region21: #{mlp_forward.1} parent=0 // pred_fallthru
    _

</llo_original>
